<compile_context>
chip_gen: v7x
topology: tpu7x:2x2x1
jax: 0.10.0
libtpu: 0.0.40
codegen_flags: <defaults>
</compile_context>

<pallas_src>
import functools

import jax
import jax.numpy as jnp
import numpy as np
from jax import lax
from jax.experimental import pallas as pl
from jax.experimental.pallas import tpu as pltpu


def _cdiv(a, b):
    return -(-a // b)


def _round_up(a, b):
    return _cdiv(a, b) * b


# ----------------------------- Pallas kernel -----------------------------
def _lora_convt1d_kernel(x_ref, w_ref, b_ref, o_ref, *, J, Lq, NB):
    """One grid step: NB batch elements x one fused (phase, Cout) channel tile.

    x_ref : (NB, Lq + J - 1, Cin)  undilated input, halo-padded, compute dtype
    w_ref : (J*Cin, TC)            folded base+LoRA polyphase weight, compute dtype
    b_ref : (1, TC)                bias replicated over phases (f32, zero in lane padding)
    o_ref : (NB*Lq, TC)            fused (batch, phase-row) x (phase, Cout) output tile
    """
    w = w_ref[...]
    b = b_ref[...]
    cols = []
    for n in range(NB):                       # static unroll; all NB share the weight tile
        x = x_ref[n]                          # (Lq + J - 1, Cin)
        if J == 1:
            cols.append(x[0:Lq, :])
        else:
            # im2col along lanes: deep contraction instead of J shallow matmuls.
            cols.append(jnp.concatenate(
                [x[J - 1 - j:J - 1 - j + Lq, :] for j in range(J)], axis=-1))
    # Stack batch elements along sublanes (Lq is a multiple of 8 -> aligned concat),
    # then ONE MXU matmul for the whole grid step.
    xcol = cols[0] if NB == 1 else jnp.concatenate(cols, axis=0)   # (NB*Lq, J*Cin)
    acc = jnp.dot(xcol, w, preferred_element_type=jnp.float32)     # (NB*Lq, TC) f32
    o_ref[...] = (acc + b).astype(o_ref.dtype)


# ----------------------------- wrapper (glue) -----------------------------
@functools.partial(
    jax.jit,
    static_argnames=("stride", "padding", "compute_dtype", "batch_block", "cout_block"))
def lora_conv_transpose1d(x, w_base, b_base, w_lora_a, w_lora_b, scaling, *,
                          stride, padding,
                          compute_dtype=jnp.bfloat16, batch_block=8, cout_block=512):
    """x: (N, Cin, L).  Returns (N, Cout, L_out) in NCW, dtype of x."""
    N, Cin, L = x.shape
    _, Cout, K = w_base.shape
    r = w_lora_a.shape[1]
    assert w_lora_a.shape == (Cin, r, K)
    assert w_lora_b.shape == (r, Cout, 1)
    assert 0 <= padding < K, "padding must satisfy 0 <= padding < kernel_size"

    s = int(stride)
    L_out = (L - 1) * s - 2 * padding + K
    J = _cdiv(K, s)                             # taps per polyphase branch
    Lq = (L - 1) + _cdiv(K - padding, s)        # phase rows needed (Lq*s >= L_out + padding)
    Lq = _round_up(Lq, 8)                       # sublane-aligned rows -> aligned stores/reshapes
    rpad = Lq - L                               # right halo (>= 0 since Lq >= L)
    Lpp = Lq + J - 1                            # padded input length seen by the kernel

    # ---- fold the LoRA path into the base weight (exact) -------------------------------
    #   delta_w[ci, co, k] = sum_r W_A[ci, r, k] * W_B[r, co]
    w_eff = w_base.astype(jnp.float32) + jnp.asarray(scaling, jnp.float32) * jnp.einsum(
        "irk,ro->iok", w_lora_a.astype(jnp.float32),
        w_lora_b[:, :, 0].astype(jnp.float32))

    # ---- polyphase weight: W_big[(j, ci), (ph, co)] = w_eff[ci, co, ph + j*s] ----------
    w_k = jnp.transpose(w_eff, (2, 0, 1))                        # (K, Cin, Cout)
    w_k = jnp.pad(w_k, ((0, J * s - K), (0, 0), (0, 0)))         # zero taps k >= K
    w_big = jnp.transpose(w_k.reshape(J, s, Cin, Cout),
                          (0, 2, 1, 3)).reshape(J * Cin, s * Cout)

    # lane-dense output: pad the fused (phase, Cout) axis up to a multiple of 128
    C_eff = s * Cout
    C_pad = _round_up(C_eff, 128)
    TC = min(C_pad, max(128, (int(cout_block) // 128) * 128))
    if C_pad % TC != 0:
        TC = 128
    w_big = jnp.pad(w_big, ((0, 0), (0, C_pad - C_eff))).astype(compute_dtype)
    bias_full = jnp.pad(jnp.tile(b_base.astype(jnp.float32), s),
                        (0, C_pad - C_eff)).reshape(1, C_pad)

    # ---- input: NCW -> NLC, undilated (polyphase), small halo pads, bf16 ----------------
    x_nlc = jnp.transpose(x, (0, 2, 1))                          # (N, L, Cin)
    x_nlc = jnp.pad(x_nlc, ((0, 0), (J - 1, rpad), (0, 0))).astype(compute_dtype)
    NB = max(1, min(int(batch_block), N))
    Npad = _round_up(N, NB)
    if Npad != N:
        x_nlc = jnp.pad(x_nlc, ((0, Npad - N), (0, 0), (0, 0)))

    kernel = functools.partial(_lora_convt1d_kernel, J=J, Lq=Lq, NB=NB)

    out = pl.pallas_call(
        kernel,
        out_shape=jax.ShapeDtypeStruct((Npad * Lq, C_pad), x.dtype),
        grid=(Npad // NB, C_pad // TC),
        in_specs=[
            pl.BlockSpec((NB, Lpp, Cin), lambda n, c: (n, 0, 0)),
            pl.BlockSpec((J * Cin, TC), lambda n, c: (0, c)),
            pl.BlockSpec((1, TC), lambda n, c: (0, c)),
        ],
        out_specs=pl.BlockSpec((NB * Lq, TC), lambda n, c: (n, c)),
        compiler_params=pltpu.CompilerParams(
            dimension_semantics=("parallel", "parallel"),
            vmem_limit_bytes=48 * 1024 * 1024),
    )(x_nlc, w_big, bias_full)

    # ---- un-polyphase: (q, ph) -> o = q*s + ph - padding; drop lane/batch/row padding ---
    out = out.reshape(Npad, Lq, C_pad)[:N, :, :C_eff]            # (N, Lq, s*Cout)
    out = out.reshape(N, Lq * s, Cout)[:, padding:padding + L_out, :]
    return jnp.transpose(out, (0, 2, 1))                         # back to NCW


# ----------------------------- pure-JAX reference -----------------------------
def _conv_transpose1d_ref(x, w, stride, padding):
    """x: (N, Cin, L), w: (Cin, Cout, K) -> (N, Cout, L_out). Matches F.conv_transpose1d."""
    K = w.shape[2]
    w_conv = jnp.transpose(jnp.flip(w, axis=2), (1, 0, 2))       # (Cout, Cin, K)
    return lax.conv_general_dilated(
        x, w_conv, window_strides=(1,),
        padding=[(K - 1 - padding, K - 1 - padding)],
        lhs_dilation=(stride,),
        dimension_numbers=("NCH", "OIH", "NCH"))


def reference_forward(x, w_base, b_base, w_lora_a, w_lora_b, *, stride, padding, scaling):
    base = _conv_transpose1d_ref(x, w_base, stride, padding) + b_base[None, :, None]
    a = _conv_transpose1d_ref(x, w_lora_a, stride, padding)      # (N, r, L_out)
    delta = jnp.einsum("nrl,rc->ncl", a, w_lora_b[:, :, 0])      # 1x1 conv_transpose
    return base + scaling * delta


def _run_case(key, N, Cin, Cout, L, K, stride, padding, r, lora_alpha):
    scaling = lora_alpha / r
    kx, kwb, kbb, kwa, kwbl = jax.random.split(key, 5)

    x = jax.random.normal(kx, (N, Cin, L), jnp.float32)
    # parameters (shapes per nn.ConvTranspose1d):
    #   base:   weight (Cin, Cout, K), bias (Cout,)
    #   lora_A: weight (Cin, r, K)     (xavier-normal-style scale)
    #   lora_B: weight (r, Cout, 1)
    w_base = jax.random.normal(kwb, (Cin, Cout, K), jnp.float32) * 0.1
    b_base = jax.random.normal(kbb, (Cout,), jnp.float32) * 0.1
    std_a = float(np.sqrt(2.0 / (Cin + r)))
    std_b = float(np.sqrt(2.0 / (r + Cout)))
    w_lora_a = jax.random.normal(kwa, (Cin, r, K), jnp.float32) * std_a
    w_lora_b = jax.random.normal(kwbl, (r, Cout, 1), jnp.float32) * std_b

    out = lora_conv_transpose1d(x, w_base, b_base, w_lora_a, w_lora_b, scaling,
                                stride=stride, padding=padding)
    out = jax.block_until_ready(out)

    ref = reference_forward(x, w_base, b_base, w_lora_a, w_lora_b,
                            stride=stride, padding=padding, scaling=scaling)
    ref = jax.block_until_ready(ref)

    L_out = (L - 1) * stride - 2 * padding + K
    assert out.shape == (N, Cout, L_out), out.shape
    # bf16 inputs with f32 accumulation vs. a pure-f32 reference -> relaxed tolerance.
    np.testing.assert_allclose(np.asarray(out), np.asarray(ref), rtol=2e-2, atol=5e-2)


# ----------------------------- driver -----------------------------
if __name__ == "__main__":
    key = jax.random.PRNGKey(0)
    k1, k2 = jax.random.split(key)

    # config 1: strided conv-transpose (stride > 1, K not a multiple of stride's phases)
    _run_case(k1, N=2, Cin=8, Cout=16, L=16, K=4, stride=2, padding=1, r=4, lora_alpha=8)
    # config 2: stride 1 (single phase, pure im2col path)
    _run_case(k2, N=2, Cin=8, Cout=16, L=16, K=3, stride=1, padding=1, r=4, lora_alpha=8)

    print("KERNEL_OK")
</pallas_src>

<mosaic_0001>
module attributes {stable_mosaic.version = 11 : i64} {
  func.func @_lora_convt1d_kernel(%arg0: i32, %arg1: i32, %arg2: memref<2x25x8xbf16, #tpu.memory_space<vmem>>, %arg3: memref<16x128xbf16, #tpu.memory_space<vmem>>, %arg4: memref<1x128xf32, #tpu.memory_space<vmem>>, %arg5: memref<48x128xf32, #tpu.memory_space<vmem>>) attributes {dimension_semantics = [#tpu.dimension_semantics<parallel>, #tpu.dimension_semantics<parallel>], iteration_bounds = array<i64: 1, 1>, scalar_prefetch = 0 : i64, scratch_operands = 0 : i64, tpu.core_type = #tpu.core_type<tc>, window_params = [{transform_indices = @transform_0, window_bounds = array<i64: 2, 25, 8>}, {transform_indices = @transform_1, window_bounds = array<i64: 16, 128>}, {transform_indices = @transform_2, window_bounds = array<i64: 1, 128>}, {transform_indices = @transform_3, window_bounds = array<i64: 48, 128>}]} {
    %c0 = arith.constant 0 : index
    %c0_0 = arith.constant 0 : index
    %0 = vector.load %arg3[%c0, %c0_0] : memref<16x128xbf16, #tpu.memory_space<vmem>>, vector<16x128xbf16>
    %c0_1 = arith.constant 0 : index
    %c0_2 = arith.constant 0 : index
    %1 = vector.load %arg4[%c0_1, %c0_2] : memref<1x128xf32, #tpu.memory_space<vmem>>, vector<1x128xf32>
    %c0_3 = arith.constant 0 : index
    %c0_4 = arith.constant 0 : index
    %c0_5 = arith.constant 0 : index
    %2 = vector.load %arg2[%c0_3, %c0_4, %c0_5] : memref<2x25x8xbf16, #tpu.memory_space<vmem>>, vector<1x25x8xbf16>
    %3 = vector.shape_cast %2 : vector<1x25x8xbf16> to vector<25x8xbf16>
    %4 = vector.extract_strided_slice %3 {offsets = [1, 0], sizes = [24, 8], strides = [1, 1]} : vector<25x8xbf16> to vector<24x8xbf16>
    %5 = vector.extract_strided_slice %3 {offsets = [0, 0], sizes = [24, 8], strides = [1, 1]} : vector<25x8xbf16> to vector<24x8xbf16>
    %6 = tpu.concatenate %4, %5 in 1 : vector<24x8xbf16>, vector<24x8xbf16> -> vector<24x16xbf16>
    %c1 = arith.constant 1 : index
    %c0_6 = arith.constant 0 : index
    %c0_7 = arith.constant 0 : index
    %7 = vector.load %arg2[%c1, %c0_6, %c0_7] : memref<2x25x8xbf16, #tpu.memory_space<vmem>>, vector<1x25x8xbf16>
    %8 = vector.shape_cast %7 : vector<1x25x8xbf16> to vector<25x8xbf16>
    %9 = vector.extract_strided_slice %8 {offsets = [1, 0], sizes = [24, 8], strides = [1, 1]} : vector<25x8xbf16> to vector<24x8xbf16>
    %10 = vector.extract_strided_slice %8 {offsets = [0, 0], sizes = [24, 8], strides = [1, 1]} : vector<25x8xbf16> to vector<24x8xbf16>
    %11 = tpu.concatenate %9, %10 in 1 : vector<24x8xbf16>, vector<24x8xbf16> -> vector<24x16xbf16>
    %12 = tpu.concatenate %6, %11 in 0 : vector<24x16xbf16>, vector<24x16xbf16> -> vector<48x16xbf16>
    %cst = arith.constant dense<0.000000e+00> : vector<48x128xf32>
    %13 = tpu.matmul %12, %0, %cst {dimension_numbers = #tpu.dot_dimension_numbers<[1], [0], [0], [1], [0, 0, 1, 1], [], []>} : vector<48x16xbf16>, vector<16x128xbf16>, vector<48x128xf32> -> vector<48x128xf32>
    %14 = vector.broadcast %1 : vector<1x128xf32> to vector<48x128xf32>
    %15 = arith.addf %13, %14 : vector<48x128xf32>
    %c0_8 = arith.constant 0 : index
    %c0_9 = arith.constant 0 : index
    %16 = vector.load %arg5[%c0_8, %c0_9] : memref<48x128xf32, #tpu.memory_space<vmem>>, vector<48x128xf32>
    tpu.vector_store %arg5[%c0_8, %c0_9], %15 {strides = array<i32>} : memref<48x128xf32, #tpu.memory_space<vmem>>, vector<48x128xf32>,
    return
  }
  func.func @transform_0(%arg0: i32, %arg1: i32) -> (i32, i32, i32) {
    %c0_i32 = arith.constant 0 : i32
    %c0_i32_0 = arith.constant 0 : i32
    %c0_i32_1 = arith.constant 0 : i32
    return %arg0, %c0_i32, %c0_i32_0 : i32, i32, i32
  }
  func.func @transform_1(%arg0: i32, %arg1: i32) -> (i32, i32) {
    %c0_i32 = arith.constant 0 : i32
    %c0_i32_0 = arith.constant 0 : i32
    return %c0_i32, %arg1 : i32, i32
  }
  func.func @transform_2(%arg0: i32, %arg1: i32) -> (i32, i32) {
    %c0_i32 = arith.constant 0 : i32
    %c0_i32_0 = arith.constant 0 : i32
    return %c0_i32, %arg1 : i32, i32
  }
  func.func @transform_3(%arg0: i32, %arg1: i32) -> (i32, i32) {
    %c0_i32 = arith.constant 0 : i32
    return %arg0, %arg1 : i32, i32
  }
}

</mosaic_0001>

<llo_original>
// kernel: tile.8
$region0: #{tile.8}
  #allocation0 [shape = 's32[1]{0}', space=sflag, size = 0x4, scoped, tag = 'scoped memory for tile.8']
  %s0 = inlined_call_operand.vmem [shape: f32[16], index: 0, kind: input, shape index: {}]
  %s1 = inlined_call_operand.vmem [shape: f32[2,16], index: 1, kind: output, shape index: {}]
  // Predicated region
  $region2: #{tile.8} parent=0 // pred_check
    _
  $region3: #{tile.8} parent=0 // pred_check_branch
    %3 = sbr.rel (0) target = $region5
  $region4: #{tile.8} parent=0 // pred_region
    _
  $region5: #{tile.8} parent=0 // pred_fallthru
    _
  %v4 = vld [vmem:[%s0] ss:$0 sm:$0xff]
  %5 = vst [vmem:[%s1] sm:$0x3] %v4

// kernel: tile.9
$region0: #{tile.9}
  %s0 = inlined_call_operand.vmem [shape: f32[2,16], index: 0, kind: input, shape index: {}]
  %s1 = inlined_call_operand.vmem [shape: f32[32], index: 1, kind: output, shape index: {}]
  $region1: #{tile.9} parent=0
    #allocation0 [shape = 'u8[4096]{0}', space=vmem, size = 0x1000, scoped, tag = 'scoped mem for output reshape']
    #allocation1 [shape = 'u8[4096]{0}', space=vmem, size = 0x1000, scoped, tag = 'scoped mem for input reshape']
    %s3 = sshllo.u32 0, 2
    %v4 = vld [vmem:[%s0] sm:%s3]
    %5 = vst [vmem:[#allocation1] sm:%s3] %v4
    %v6 = vld [vmem:[#allocation1] sm:$0x1]
    %vm7 = vcmask 130048
    %8 = vst.msk [vmem:[#allocation0] sm:$0x1] %vm7, %v6
    %s9 = scalar_lea.vmem [#allocation1], 1
    %v10 = vld [vmem:[%s9] sm:$0x1]
    %11 = vrot.lane.b32.xlu0 %v10, 16
    %v12 = vpop.permute.xlu0 %11
    %vm13 = vcmask 261248
    %14 = vst.msk [vmem:[#allocation0] sm:$0x1] %vm13, %v12
    %s16 = sshllo.u32 0, 1
    %v18 = vld [vmem:[#allocation0] sm:%s16]
    %s19 = sshllo.u32 0, 1
    %20 = vst [vmem:[%s1] sm:%s19] %v18

// kernel: lora_conv_transpose1d.1
$region0: #{lora_conv_transpose1d.1}
  #allocation0 [shape = 'u32[]', space=smem, size = 0x4, offset = 0x4, fixed_abs, tag = 'smem constant byte address 0x4 - core index']
  #allocation1 [shape = 'u32[144,128]{1,0:T(1,128)}', space=vmem, size = 0x12000, scoped, tag = 'internal scratch']
  %s0 = inlined_call_operand.vmem [shape: bf16[2,25,8], index: 0, kind: input, shape index: {}]
  %s1 = inlined_call_operand.vmem [shape: bf16[16,128], index: 1, kind: input, shape index: {}]
  %s2 = inlined_call_operand.vmem [shape: f32[1,128], index: 2, kind: input, shape index: {}]
  %s3 = inlined_call_operand.vmem [shape: f32[48,128], index: 3, kind: output, shape index: {}]
  %s4 = sld [smem:[#allocation0]]
  $region22: #{lora_conv_transpose1d.1} parent=0
    _
  %s6 = ssub.s32 1, %s4
  %s7 = scalar_select 0, %s6, %s4
  // Predicated region
  $region2: #{lora_conv_transpose1d.1} parent=0 // pred_check
    _
  $region3: #{lora_conv_transpose1d.1} parent=0 // pred_check_branch
    %9 = sbr.rel (0) target = $region5
  $region4: #{lora_conv_transpose1d.1} parent=0 // pred_region
    _
  $region5: #{lora_conv_transpose1d.1} parent=0 // pred_fallthru
    _
  // Predicated region
  $region6: #{lora_conv_transpose1d.1} parent=0 // pred_check
    _
  $region7: #{lora_conv_transpose1d.1} parent=0 // pred_check_branch
    %11 = sbr.rel (0) target = $region9
  $region8: #{lora_conv_transpose1d.1} parent=0 // pred_region
    _
  $region9: #{lora_conv_transpose1d.1} parent=0 // pred_fallthru
    _
  // Predicated region
  $region10: #{lora_conv_transpose1d.1} parent=0 // pred_check
    _
  $region11: #{lora_conv_transpose1d.1} parent=0 // pred_check_branch
    %13 = sbr.rel (0) target = $region13
  $region12: #{lora_conv_transpose1d.1} parent=0 // pred_region
    _
  $region13: #{lora_conv_transpose1d.1} parent=0 // pred_fallthru
    _
  %v15 = vld [vmem:[%s1] sm:$0xf]
  %v16 = vld [vmem:[%s1 + $0x4] sm:$0xf]
  %v17 = vld [vmem:[%s2] sm:$0x1]
  %v18 = vld [vmem:[%s0] sm:$0xf]
  %v19 = vld [vmem:[%s0 + $0x4] sm:$0xf]
  %v20 = vld [vmem:[%s0 + $0x8] sm:$0xf]
  %v21 = vld [vmem:[%s0 + $0xc] sm:$0x1]
  %v26 = vunpack.c.l.b16 %v18
  %v27 = vunpack.c.l.b16 %v19
  %v28 = vunpack.c.l.b16 %v20
  %v29 = vunpack.c.l.b16 %v21
  %v30 = vpack.c.b16 %v27, %v26
  %v31 = vpack.c.b16 %v29, %v28
  %v32 = vpack.c.b16 %v28, %v28
  %vm33 = vsmask.f32 256
  %v35 = vshrl.u32 %v30, 16
  %v37 = vrot.slane %v35, 7
  %v38 = vshll.u32 %v30, 16
  %v40 = vor.u32 %v37, %v38
  %v42 = vshrl.u32 %v32, 16
  %v44 = vrot.slane %v42, 7
  %v45 = vshll.u32 %v32, 16
  %v47 = vor.u32 %v44, %v45
  %v48 = vsel %vm33, %v37, %v47
  %49 = vrot.lane.b32.xlu0 %v40, 8
  %v50 = vpop.permute.xlu0 %49
  %51 = vrot.lane.b32.xlu0 %v48, 8
  %v52 = vpop.permute.xlu0 %51
  %vm53 = vcmask 64512
  %v55 = vsel %vm53, %v30, %v50
  %v58 = vsel %vm53, %v31, %v52
  %s59 = scalar_lea.vmem %s0, 16
  %v60 = vld [vmem:[%s59] sm:$0xf]
  %v61 = vld [vmem:[%s59 + $0x4] sm:$0xf]
  %v62 = vld [vmem:[%s59 + $0x8] sm:$0xf]
  %v63 = vld [vmem:[%s59 + $0xc] sm:$0x1]
  %v68 = vunpack.c.l.b16 %v60
  %v69 = vunpack.c.l.b16 %v61
  %v70 = vunpack.c.l.b16 %v62
  %v71 = vunpack.c.l.b16 %v63
  %v72 = vpack.c.b16 %v69, %v68
  %v73 = vpack.c.b16 %v71, %v70
  %v74 = vpack.c.b16 %v70, %v70
  %v76 = vshrl.u32 %v72, 16
  %v78 = vrot.slane %v76, 7
  %v79 = vshll.u32 %v72, 16
  %v81 = vor.u32 %v78, %v79
  %v83 = vshrl.u32 %v74, 16
  %v85 = vrot.slane %v83, 7
  %v86 = vshll.u32 %v74, 16
  %v88 = vor.u32 %v85, %v86
  %v89 = vsel %vm33, %v78, %v88
  %90 = vrot.lane.b32.xlu0 %v81, 8
  %v91 = vpop.permute.xlu0 %90
  %92 = vrot.lane.b32.xlu0 %v89, 8
  %v93 = vpop.permute.xlu0 %92
  %v95 = vsel %vm53, %v72, %v91
  %v98 = vsel %vm53, %v73, %v93
  %vm99 = vsmask.f32 7424
  %v100 = vshrl.u32 %v55, 16
  %v102 = vshll.u32 %v55, 16
  %v104 = vrot.slane %v102, 1
  %v105 = vor.u32 %v100, %v104
  %v106 = vshll.u32 %v58, 16
  %v108 = vrot.slane %v106, 1
  %v109 = vsel %vm99, %v105, %v108
  %v110 = vshrl.u32 %v58, 16
  %v112 = vor.u32 %v110, %v108
  %vm113 = vsmask.f32 3328
  %v114 = vshrl.u32 %v95, 16
  %v116 = vrot.slane %v114, 4
  %v117 = vshll.u32 %v95, 16
  %v119 = vrot.slane %v117, 5
  %v120 = vor.u32 %v116, %v119
  %v121 = vshrl.u32 %v98, 16
  %v123 = vrot.slane %v121, 4
  %v124 = vshll.u32 %v98, 16
  %v126 = vrot.slane %v124, 5
  %v127 = vor.u32 %v123, %v126
  %v128 = vsel %vm113, %v120, %v127
  %vm129 = vcmask 1043456
  %v132 = vsel %vm129, %v112, %v120
  %v134 = vlaneseq
  %v135 = vshrl.u32 %v134, 7
  %v136 = vsub.s32 0, %v135
  %v137 = vrot.slane %v17, %v136
  %v141 = vunpack.c.l.b16 %v15
  %v142 = vunpack.c.l.b16 %v16
  %v143 = vpack.c.b16 %v142, %v141
  %vm145 = vcmask 130048
  %v147 = vsel %vm145, %v109, 0
  %v149 = vsel %vm145, %v132, 0
  %v152 = vsel %vm145, %v128, 0
  %154 = vmatprep.subr.bf16.mxu0 0
  %155 = vmatpush1.bf16.msra.mxu0 %v143
  %156 = vmatprep.subr.bf16.mxu0 0
  %157 = vmatpush1.bf16.msra.mxu0 0
  %158 = vmatprep.subr.bf16.mxu0 0
  %159 = vmatpush1.bf16.msra.mxu0 0
  %160 = vmatprep.subr.bf16.mxu0 0
  %161 = vmatpush1.bf16.msra.mxu0 0
  %162 = vmatprep.subr.bf16.mxu0 0
  %163 = vmatpush1.bf16.msra.mxu0 0
  %164 = vmatprep.subr.bf16.mxu0 0
  %165 = vmatpush1.bf16.msra.mxu0 0
  %166 = vmatprep.subr.bf16.mxu0 0
  %167 = vmatpush1.bf16.msra.mxu0 0
  %168 = vmatprep.subr.bf16.mxu0 0
  %169 = vmatpush1.bf16.msra.mxu0 0
  %170 = vmatprep.subr.bf16.mxu0 0
  %171 = vmatpush1.bf16.msra.mxu0 0
  %172 = vmatprep.subr.bf16.mxu0 0
  %173 = vmatpush1.bf16.msra.mxu0 0
  %174 = vmatprep.subr.bf16.mxu0 0
  %175 = vmatpush1.bf16.msra.mxu0 0
  %176 = vmatprep.subr.bf16.mxu0 0
  %177 = vmatpush1.bf16.msra.mxu0 0
  %178 = vmatprep.subr.bf16.mxu0 0
  %179 = vmatpush1.bf16.msra.mxu0 0
  %180 = vmatprep.subr.bf16.mxu0 0
  %181 = vmatpush1.bf16.msra.mxu0 0
  %182 = vmatprep.subr.bf16.mxu0 0
  %183 = vmatpush1.bf16.msra.mxu0 0
  %184 = vmatprep.subr.bf16.mxu0 0
  %185 = vmatpush1.bf16.msra.mxu0 0
  %186 = vmatprep.mubr.bf16.mxu0 0
  %187 = vmatmul.mubr.bf16.gmra.mrb[0].mxu0 %v147
  %v188 = vpop.f32.mrb[0].mxu0
  %v189 = vadd.f32 %v137, %v188
  %v190 = vpop.f32.mrb[0].mxu0
  %v191 = vpop.f32.mrb[0].mxu0
  %v192 = vadd.f32 %v137, %v191
  %v193 = vpop.f32.mrb[0].mxu0
  %194 = vmatprep.mubr.bf16.mxu0 0
  %195 = vmatmul.mubr.bf16.gmra.mrb[0].mxu0 %v149
  %v196 = vpop.f32.mrb[0].mxu0
  %v197 = vadd.f32 %v137, %v196
  %v198 = vpop.f32.mrb[0].mxu0
  %v199 = vpop.f32.mrb[0].mxu0
  %v200 = vadd.f32 %v137, %v199
  %v201 = vpop.f32.mrb[0].mxu0
  %202 = vmatprep.mubr.bf16.mxu0 0
  %203 = vmatmul.mubr.bf16.gmra.mrb[0].mxu0 %v152
  %v204 = vpop.f32.mrb[0].mxu0
  %v205 = vadd.f32 %v137, %v204
  %v206 = vpop.f32.mrb[0].mxu0
  %v207 = vpop.f32.mrb[0].mxu0
  %v208 = vadd.f32 %v137, %v207
  %v209 = vpop.f32.mrb[0].mxu0
  %210 = vdwg.mxu0
  %211 = vst [vmem:[%s3] sm:$0xff] %v189
  %212 = vst [vmem:[%s3 + $0x8] sm:$0xff] %v192
  %213 = vst [vmem:[%s3 + $0x10] sm:$0xff] %v197
  %214 = vst [vmem:[%s3 + $0x18] sm:$0xff] %v200
  %215 = vst [vmem:[%s3 + $0x20] sm:$0xff] %v205
  %216 = vst [vmem:[%s3 + $0x28] sm:$0xff] %v208
  // Predicated region
  $region14: #{lora_conv_transpose1d.1} parent=0 // pred_check
    _
  $region15: #{lora_conv_transpose1d.1} parent=0 // pred_check_branch
    %218 = sbr.rel (0) target = $region17
  $region16: #{lora_conv_transpose1d.1} parent=0 // pred_region
    _
  $region17: #{lora_conv_transpose1d.1} parent=0 // pred_fallthru
    _
  // Predicated region
  $region18: #{lora_conv_transpose1d.1} parent=0 // pred_check
    _
  $region19: #{lora_conv_transpose1d.1} parent=0 // pred_check_branch
    %220 = sbr.rel (0) target = $region21
  $region20: #{lora_conv_transpose1d.1} parent=0 // pred_region
    _
  $region21: #{lora_conv_transpose1d.1} parent=0 // pred_fallthru
    _

</llo_original>
